<compile_context>
chip_gen: v7x
topology: tpu7x:2x2x1
jax: 0.10.0
libtpu: 0.0.40
codegen_flags: <defaults>
</compile_context>

<pallas_src>
import jax
import jax.numpy as jnp
from jax.experimental import pallas as pl
from jax.experimental.pallas import tpu as pltpu


def _round_up(x, m):
    return ((x + m - 1) // m) * m


def _sublane_multiple(dtype):
    # 32-bit: 8 rows/vreg; bf16 packs 16; int8/fp8 pack 32.
    return max(8, 32 // jnp.dtype(dtype).itemsize)


def _tile_config(N, K):
    """Generation-aware tile caps + VMEM limit."""
    try:
        info = pltpu.get_tpu_info()
        vmem_bytes = getattr(info, "vmem_capacity_bytes", 64 * 1024 * 1024)
    except Exception:
        vmem_bytes = 64 * 1024 * 1024  # conservative (v7x-sized) fallback
    big_vmem = vmem_bytes >= 96 * 1024 * 1024
    if big_vmem:
        # v5e / v6e: 128 MiB VMEM -> large tiles, high vmem cap.
        tm_cap, tn_cap, tk_cap = 512, 512, 1024
        vmem_limit = 96 * 1024 * 1024
    else:
        # v7x: 64 MiB VMEM, 2 TensorCores -> smaller M tile, conservative cap.
        tm_cap, tn_cap, tk_cap = 256, 512, 1024
        vmem_limit = 48 * 1024 * 1024
    tn = min(tn_cap, _round_up(N, 128))   # lane-dense output
    tk = min(tk_cap, _round_up(K, 128))
    return tm_cap, tn, tk, vmem_limit, big_vmem


def fc_kernel(x_ref, w_ref, b_ref, o_ref):
    # x_ref: (tm, tk) bf16    w_ref: (tk, tn) bf16  (pre-transposed W^T tile)
    # b_ref: (1, tn)  f32     o_ref: (tm, tn) f32   (resident across the K axis)
    @pl.when(pl.program_id(2) == 0)
    def _():
        # Bias-initialize the accumulator; the only epilogue is the implicit
        # writeback when the (i, j) output block changes.
        o_ref[...] = jnp.broadcast_to(b_ref[...], o_ref.shape)

    o_ref[...] += jnp.dot(x_ref[...], w_ref[...],
                          preferred_element_type=jnp.float32)


def _fc_pallas(x, wt, bias2d, tm, tn, tk, vmem_limit, deep_buffer):
    Bp, Kp = x.shape
    _, Np = wt.shape
    grid = (Bp // tm, Np // tn, Kp // tk)
    m_tiles, n_tiles, k_tiles = grid

    flops = 2 * Bp * Np * Kp
    bytes_accessed = (
        n_tiles * Bp * Kp * x.dtype.itemsize        # x streamed once per N tile
        + m_tiles * Kp * Np * wt.dtype.itemsize     # W streamed once per M tile
        + m_tiles * Np * bias2d.dtype.itemsize
        + Bp * Np * jnp.dtype(jnp.float32).itemsize # output written once
    )

    w_spec_kwargs = {}
    if deep_buffer and k_tiles >= 3:
        # Bandwidth-poor big-VMEM parts (v5e): deeper weight buffering hides
        # exposed DMA latency; VMEM is abundant there.
        w_spec_kwargs["pipeline_mode"] = pl.Buffered(3)

    return pl.pallas_call(
        fc_kernel,
        out_shape=jax.ShapeDtypeStruct((Bp, Np), jnp.float32),
        grid_spec=pltpu.PrefetchScalarGridSpec(
            num_scalar_prefetch=0,
            grid=grid,
            in_specs=[
                pl.BlockSpec((tm, tk), lambda i, j, k: (i, k)),                   # x tile
                pl.BlockSpec((tk, tn), lambda i, j, k: (k, j), **w_spec_kwargs),  # W^T tile
                pl.BlockSpec((1, tn), lambda i, j, k: (0, j)),                    # bias tile
            ],
            out_specs=pl.BlockSpec((tm, tn), lambda i, j, k: (i, j)),
        ),
        compiler_params=pltpu.CompilerParams(
            dimension_semantics=("parallel", "parallel", "arbitrary"),
            vmem_limit_bytes=vmem_limit,
        ),
        cost_estimate=pl.CostEstimate(
            flops=flops, transcendentals=0, bytes_accessed=bytes_accessed),
    )(x, wt, bias2d)


class FCLayerPallas:
    """Pallas TPU equivalent of the PyTorch FCLayer (nn.Linear) forward."""

    def __init__(self, weight, bias, param_dtype=jnp.bfloat16):
        # weight: (output_size, input_size)  (PyTorch Linear convention)
        # bias:   (output_size,)
        N, K = weight.shape
        assert bias.shape == (N,), "bias/weight shape mismatch"
        self.N, self.K = N, K
        self.param_dtype = jnp.dtype(param_dtype)

        tm_cap, tn, tk, vmem_limit, big_vmem = _tile_config(N, K)
        self._tm_cap, self._tn, self._tk = tm_cap, tn, tk
        self._vmem_limit, self._big_vmem = vmem_limit, big_vmem

        Np = _round_up(N, tn)
        Kp = _round_up(K, tk)
        # One-time parameter prep (NOT in the per-call path): transpose to
        # (K, N), cast to the MXU dtype, zero-pad to tile multiples.
        wt = jnp.asarray(weight).T.astype(self.param_dtype)          # (K, N)
        self.wt_padded = jnp.pad(wt, ((0, Kp - K), (0, Np - N)))     # (Kp, Np)
        b2d = jnp.asarray(bias, jnp.float32).reshape(1, N)
        self.bias_padded = jnp.pad(b2d, ((0, 0), (0, Np - N)))       # (1, Np)

        self._fwd = jax.jit(self._forward_impl)

    def __call__(self, x):
        return self._fwd(x, self.wt_padded, self.bias_padded)

    def _forward_impl(self, x, wt_p, b_p):
        N, K = self.N, self.K
        assert x.shape[-1] == K, "input_size mismatch"
        lead = x.shape[:-1]
        x2 = x.reshape(-1, K)
        B = x2.shape[0]

        act_dtype = self.param_dtype
        tm = min(self._tm_cap, _round_up(B, _sublane_multiple(act_dtype)))
        Bp = _round_up(B, tm)
        Kp, Np = wt_p.shape
        tk, tn = self._tk, self._tn

        # Megacore occupancy: make sure the two "parallel" axes expose at least
        # 2 output blocks when the shape allows (v7x has 2 TensorCores).
        if (Bp // tm) * (Np // tn) < 2 and Np >= 256:
            cand = (Np // 2) // 128 * 128
            while cand >= 128 and Np % cand:
                cand -= 128
            if cand >= 128:
                tn = cand

        xp = jnp.pad(x2.astype(act_dtype), ((0, Bp - B), (0, Kp - K)))
        yp = _fc_pallas(xp, wt_p, b_p, tm, tn, tk,
                        self._vmem_limit, self._big_vmem)
        y = yp[:B, :N]
        return y.reshape(lead + (N,))


if __name__ == "__main__":
    key = jax.random.PRNGKey(0)
    k_x, k_w, k_b = jax.random.split(key, 3)

    batch = 8
    input_size = 32
    output_size = 16

    # nn.Linear default init: U(-1/sqrt(in), 1/sqrt(in)) for weight and bias.
    bound = 1.0 / (input_size ** 0.5)
    weight = jax.random.uniform(k_w, (output_size, input_size),
                                dtype=jnp.float32, minval=-bound, maxval=bound)
    bias = jax.random.uniform(k_b, (output_size,),
                              dtype=jnp.float32, minval=-bound, maxval=bound)
    x = jax.random.normal(k_x, (batch, input_size), dtype=jnp.float32)

    layer = FCLayerPallas(weight, bias)   # one-time transpose / pad / bf16 cast
    y = layer(x)
    jax.block_until_ready(y)

    # Reference check against plain f32 JAX. The kernel feeds the MXU bf16
    # operands (f32 accumulation), so tolerance is bf16-level.
    y_ref = x @ weight.T + bias
    assert y.shape == (batch, output_size)
    assert jnp.allclose(y, y_ref, atol=3e-2, rtol=3e-2), "mismatch vs reference"

    print("KERNEL_OK")
</pallas_src>

<mosaic_0001>
module attributes {stable_mosaic.version = 11 : i64} {
  func.func @fc_kernel(%arg0: i32, %arg1: i32, %arg2: i32, %arg3: memref<16x128xbf16, #tpu.memory_space<vmem>>, %arg4: memref<128x128xbf16, #tpu.memory_space<vmem>>, %arg5: memref<1x128xf32, #tpu.memory_space<vmem>>, %arg6: memref<16x128xf32, #tpu.memory_space<vmem>>) attributes {dimension_semantics = [#tpu.dimension_semantics<parallel>, #tpu.dimension_semantics<parallel>, #tpu.dimension_semantics<arbitrary>], iteration_bounds = array<i64: 1, 1, 1>, scalar_prefetch = 0 : i64, scratch_operands = 0 : i64, tpu.core_type = #tpu.core_type<tc>, window_params = [{transform_indices = @transform_0, window_bounds = array<i64: 16, 128>}, {transform_indices = @transform_1, window_bounds = array<i64: 128, 128>}, {transform_indices = @transform_2, window_bounds = array<i64: 1, 128>}, {transform_indices = @transform_3, window_bounds = array<i64: 16, 128>}]} {
    %c0_i32 = arith.constant 0 : i32
    %0 = arith.cmpi eq, %arg2, %c0_i32 : i32
    %1 = arith.extui %0 : i1 to i32
    %c0_i32_0 = arith.constant 0 : i32
    %2 = arith.cmpi ne, %1, %c0_i32_0 : i32
    scf.if %2 {
      %c0_8 = arith.constant 0 : index
      %c0_9 = arith.constant 0 : index
      %9 = vector.load %arg5[%c0_8, %c0_9] : memref<1x128xf32, #tpu.memory_space<vmem>>, vector<1x128xf32>
      %10 = vector.shape_cast %9 : vector<1x128xf32> to vector<1x128xf32>
      %11 = vector.broadcast %10 : vector<1x128xf32> to vector<16x128xf32>
      %c0_10 = arith.constant 0 : index
      %c0_11 = arith.constant 0 : index
      %12 = vector.load %arg6[%c0_10, %c0_11] : memref<16x128xf32, #tpu.memory_space<vmem>>, vector<16x128xf32>
      tpu.vector_store %arg6[%c0_10, %c0_11], %11 {strides = array<i32>} : memref<16x128xf32, #tpu.memory_space<vmem>>, vector<16x128xf32>,
    } else {
    }
    %c0 = arith.constant 0 : index
    %c0_1 = arith.constant 0 : index
    %3 = vector.load %arg6[%c0, %c0_1] : memref<16x128xf32, #tpu.memory_space<vmem>>, vector<16x128xf32>
    %c0_2 = arith.constant 0 : index
    %c0_3 = arith.constant 0 : index
    %4 = vector.load %arg3[%c0_2, %c0_3] : memref<16x128xbf16, #tpu.memory_space<vmem>>, vector<16x128xbf16>
    %c0_4 = arith.constant 0 : index
    %c0_5 = arith.constant 0 : index
    %5 = vector.load %arg4[%c0_4, %c0_5] : memref<128x128xbf16, #tpu.memory_space<vmem>>, vector<128x128xbf16>
    %cst = arith.constant dense<0.000000e+00> : vector<16x128xf32>
    %6 = tpu.matmul %4, %5, %cst {dimension_numbers = #tpu.dot_dimension_numbers<[1], [0], [0], [1], [0, 0, 1, 1], [], []>} : vector<16x128xbf16>, vector<128x128xbf16>, vector<16x128xf32> -> vector<16x128xf32>
    %7 = arith.addf %3, %6 : vector<16x128xf32>
    %c0_6 = arith.constant 0 : index
    %c0_7 = arith.constant 0 : index
    %8 = vector.load %arg6[%c0_6, %c0_7] : memref<16x128xf32, #tpu.memory_space<vmem>>, vector<16x128xf32>
    tpu.vector_store %arg6[%c0_6, %c0_7], %7 {strides = array<i32>} : memref<16x128xf32, #tpu.memory_space<vmem>>, vector<16x128xf32>,
    return
  }
  func.func @transform_0(%arg0: i32, %arg1: i32, %arg2: i32) -> (i32, i32) {
    %c0_i32 = arith.constant 0 : i32
    return %arg0, %arg2 : i32, i32
  }
  func.func @transform_1(%arg0: i32, %arg1: i32, %arg2: i32) -> (i32, i32) {
    %c0_i32 = arith.constant 0 : i32
    return %arg2, %arg1 : i32, i32
  }
  func.func @transform_2(%arg0: i32, %arg1: i32, %arg2: i32) -> (i32, i32) {
    %c0_i32 = arith.constant 0 : i32
    %c0_i32_0 = arith.constant 0 : i32
    return %c0_i32, %arg1 : i32, i32
  }
  func.func @transform_3(%arg0: i32, %arg1: i32, %arg2: i32) -> (i32, i32) {
    %c0_i32 = arith.constant 0 : i32
    return %arg0, %arg1 : i32, i32
  }
}

</mosaic_0001>

<llo_original>
// kernel: _forward_impl.1
$region0: #{_forward_impl.1}
  #allocation0 [shape = 'u32[]', space=smem, size = 0x4, offset = 0x4, fixed_abs, tag = 'smem constant byte address 0x4 - core index']
  #allocation1 [shape = 'u32[144,128]{1,0:T(1,128)}', space=vmem, size = 0x12000, scoped, tag = 'internal scratch']
  %s0 = inlined_call_operand.vmem [shape: bf16[16,128], index: 0, kind: input, shape index: {}]
  %s1 = inlined_call_operand.hbm [shape: bf16[128,128], index: 1, kind: input, shape index: {}]
  %s2 = inlined_call_operand.vmem [shape: f32[1,128], index: 2, kind: input, shape index: {}]
  %s3 = inlined_call_operand.vmem [shape: f32[16,128], index: 3, kind: output, shape index: {}]
  %s4 = sld [smem:[#allocation0]]
  $region30: #{_forward_impl.1} parent=0
    _
  %s6 = ssub.s32 1, %s4
  %s7 = scalar_select 0, %s6, %s4
  $region1: #{_forward_impl.1} parent=0
    #allocation2 [shape = 'u8[32768]{0}', space=vmem, size = 0x8000, scoped, tag = 'input window, operand 1, single buffered']
    #allocation3 [shape = 's32[1]{0}', space=sflag, size = 0x4, scoped, tag = 'scoped memory for _forward_impl.1']
    %8 = vsyncpa [#allocation3], 0
    // Predicated region
    $region2: #{_forward_impl.1} parent=1 // pred_check
      _
    $region3: #{_forward_impl.1} parent=1 // pred_check_branch
      %10 = sbr.rel (0) target = $region5
    $region4: #{_forward_impl.1} parent=1 // pred_region
      _
    $region5: #{_forward_impl.1} parent=1 // pred_fallthru
      _
    // Predicated region
    $region6: #{_forward_impl.1} parent=1 // pred_check
      _
    $region7: #{_forward_impl.1} parent=1 // pred_check_branch
      %12 = sbr.rel (0) target = $region9
    $region8: #{_forward_impl.1} parent=1 // pred_region
      %s14 = ssub.s32 1024, 1024
      %15 = vsyncadd [#allocation3], %s14
      %s16 = sshll.u32 [#allocation2], 4
      %s17 = int_to_ptr.vmem [resolvable:$true] %s16
      %22 = dma.hbm_to_vmem [thread:$0]  %s1, 1024, %s17, [#allocation3], 64, 64, 4
    $region9: #{_forward_impl.1} parent=1 // pred_fallthru
      _
    // Predicated region
    $region10: #{_forward_impl.1} parent=1 // pred_check
      _
    $region11: #{_forward_impl.1} parent=1 // pred_check_branch
      %24 = sbr.rel (0) target = $region13
    $region12: #{_forward_impl.1} parent=1 // pred_region
      _
    $region13: #{_forward_impl.1} parent=1 // pred_fallthru
      _
    // Predicated region
    $region14: #{_forward_impl.1} parent=1 // pred_check
      _
    $region15: #{_forward_impl.1} parent=1 // pred_check_branch
      %26 = sbr.rel (0) target = $region17
    $region16: #{_forward_impl.1} parent=1 // pred_region
      %27 = dma.done [#allocation3], 1024
    $region17: #{_forward_impl.1} parent=1 // pred_fallthru
      _
    %p29 = scmp.eq.s32.totalorder 0, 0
    // Predicated region
    $region18: #{_forward_impl.1} parent=1 // pred_check
      %p30 = pneg %p29
    $region19: #{_forward_impl.1} parent=1 // pred_check_branch
      %32 = sbr.rel (%p30) target = $region21
    $region20: #{_forward_impl.1} parent=1 // pred_region
      %v33 = vld [vmem:[%s2] sm:$0x1]
      %v35 = vlaneseq
      %v36 = vshrl.u32 %v35, 7
      %v37 = vsub.s32 0, %v36
      %v38 = vrot.slane %v33, %v37
      %40 = vst [vmem:[%s3] sm:$0xff] %v38
      %41 = vst [vmem:[%s3 + $0x8] sm:$0xff] %v38
    $region21: #{_forward_impl.1} parent=1 // pred_fallthru
      _
    %v42 = vld [vmem:[%s3] sm:$0xff]
    %v43 = vld [vmem:[%s3 + $0x8] sm:$0xff]
    %v44 = vld [vmem:[%s0] sm:$0xf]
    %v45 = vld [vmem:[%s0 + $0x4] sm:$0xf]
    %v46 = vld [vmem:[#allocation2] sm:$0xf]
    %v47 = vld [vmem:[#allocation2 + $0x4] sm:$0xf]
    %v48 = vld [vmem:[#allocation2 + $0x8] sm:$0xf]
    %v49 = vld [vmem:[#allocation2 + $0xc] sm:$0xf]
    %v50 = vld [vmem:[#allocation2 + $0x10] sm:$0xf]
    %v51 = vld [vmem:[#allocation2 + $0x14] sm:$0xf]
    %v52 = vld [vmem:[#allocation2 + $0x18] sm:$0xf]
    %v53 = vld [vmem:[#allocation2 + $0x1c] sm:$0xf]
    %v54 = vld [vmem:[#allocation2 + $0x20] sm:$0xf]
    %v55 = vld [vmem:[#allocation2 + $0x24] sm:$0xf]
    %v56 = vld [vmem:[#allocation2 + $0x28] sm:$0xf]
    %v57 = vld [vmem:[#allocation2 + $0x2c] sm:$0xf]
    %v58 = vld [vmem:[#allocation2 + $0x30] sm:$0xf]
    %v59 = vld [vmem:[#allocation2 + $0x34] sm:$0xf]
    %v60 = vld [vmem:[#allocation2 + $0x38] sm:$0xf]
    %v61 = vld [vmem:[#allocation2 + $0x3c] sm:$0xf]
    %v64 = vunpack.c.l.b16 %v44
    %v65 = vunpack.c.l.b16 %v45
    %v66 = vpack.c.b16 %v65, %v64
    %v84 = vunpack.c.l.b16 %v46
    %v85 = vunpack.c.l.b16 %v47
    %v86 = vunpack.c.l.b16 %v48
    %v87 = vunpack.c.l.b16 %v49
    %v88 = vunpack.c.l.b16 %v50
    %v89 = vunpack.c.l.b16 %v51
    %v90 = vunpack.c.l.b16 %v52
    %v91 = vunpack.c.l.b16 %v53
    %v92 = vunpack.c.l.b16 %v54
    %v93 = vunpack.c.l.b16 %v55
    %v94 = vunpack.c.l.b16 %v56
    %v95 = vunpack.c.l.b16 %v57
    %v96 = vunpack.c.l.b16 %v58
    %v97 = vunpack.c.l.b16 %v59
    %v98 = vunpack.c.l.b16 %v60
    %v99 = vunpack.c.l.b16 %v61
    %v100 = vpack.c.b16 %v85, %v84
    %v101 = vpack.c.b16 %v87, %v86
    %v102 = vpack.c.b16 %v89, %v88
    %v103 = vpack.c.b16 %v91, %v90
    %v104 = vpack.c.b16 %v93, %v92
    %v105 = vpack.c.b16 %v95, %v94
    %v106 = vpack.c.b16 %v97, %v96
    %v107 = vpack.c.b16 %v99, %v98
    %116 = vmatprep.subr.bf16.mxu0 0
    %117 = vmatpush1.bf16.msra.mxu0 %v100
    %118 = vmatprep.subr.bf16.mxu0 0
    %119 = vmatpush1.bf16.msra.mxu0 %v101
    %120 = vmatprep.subr.bf16.mxu0 0
    %121 = vmatpush1.bf16.msra.mxu0 %v102
    %122 = vmatprep.subr.bf16.mxu0 0
    %123 = vmatpush1.bf16.msra.mxu0 %v103
    %124 = vmatprep.subr.bf16.mxu0 0
    %125 = vmatpush1.bf16.msra.mxu0 %v104
    %126 = vmatprep.subr.bf16.mxu0 0
    %127 = vmatpush1.bf16.msra.mxu0 %v105
    %128 = vmatprep.subr.bf16.mxu0 0
    %129 = vmatpush1.bf16.msra.mxu0 %v106
    %130 = vmatprep.subr.bf16.mxu0 0
    %131 = vmatpush1.bf16.msra.mxu0 %v107
    %132 = vmatprep.subr.bf16.mxu0 0
    %133 = vmatpush1.bf16.msra.mxu0 0
    %134 = vmatprep.subr.bf16.mxu0 0
    %135 = vmatpush1.bf16.msra.mxu0 0
    %136 = vmatprep.subr.bf16.mxu0 0
    %137 = vmatpush1.bf16.msra.mxu0 0
    %138 = vmatprep.subr.bf16.mxu0 0
    %139 = vmatpush1.bf16.msra.mxu0 0
    %140 = vmatprep.subr.bf16.mxu0 0
    %141 = vmatpush1.bf16.msra.mxu0 0
    %142 = vmatprep.subr.bf16.mxu0 0
    %143 = vmatpush1.bf16.msra.mxu0 0
    %144 = vmatprep.subr.bf16.mxu0 0
    %145 = vmatpush1.bf16.msra.mxu0 0
    %146 = vmatprep.subr.bf16.mxu0 0
    %147 = vmatpush1.bf16.msra.mxu0 0
    %148 = vmatprep.mubr.bf16.mxu0 0
    %149 = vmatmul.mubr.bf16.gmra.mrb[0].mxu0 %v66
    %v150 = vpop.f32.mrb[0].mxu0
    %v151 = vadd.f32 0.0, %v150
    %v152 = vpop.f32.mrb[0].mxu0
    %v153 = vpop.f32.mrb[0].mxu0
    %v154 = vadd.f32 0.0, %v153
    %v155 = vpop.f32.mrb[0].mxu0
    %156 = vdwg.mxu0
    %v157 = vadd.f32 %v42, %v151
    %v158 = vadd.f32 %v43, %v154
    %159 = vst [vmem:[%s3] sm:$0xff] %v157
    %160 = vst [vmem:[%s3 + $0x8] sm:$0xff] %v158
    // Predicated region
    $region22: #{_forward_impl.1} parent=1 // pred_check
      _
    $region23: #{_forward_impl.1} parent=1 // pred_check_branch
      %162 = sbr.rel (0) target = $region25
    $region24: #{_forward_impl.1} parent=1 // pred_region
      _
    $region25: #{_forward_impl.1} parent=1 // pred_fallthru
      _
    // Predicated region
    $region26: #{_forward_impl.1} parent=1 // pred_check
      _
    $region27: #{_forward_impl.1} parent=1 // pred_check_branch
      %164 = sbr.rel (0) target = $region29
    $region28: #{_forward_impl.1} parent=1 // pred_region
      _
    $region29: #{_forward_impl.1} parent=1 // pred_fallthru
      _
    %165 = vsyncpa [#allocation3], 1

</llo_original>
